<compile_context>
chip_gen: v7x
topology: tpu7x:2x2x1
jax: 0.10.0
libtpu: 0.0.40
codegen_flags: <defaults>
</compile_context>

<pallas_src>
import functools

import numpy as np
import jax
import jax.numpy as jnp
from jax.experimental import pallas as pl
from jax.experimental.pallas import tpu as pltpu


def _round_up(x, m):
    return ((x + m - 1) // m) * m


def _vmem_capacity_bytes():
    try:
        return int(pltpu.get_tpu_info().vmem_capacity_bytes)
    except Exception:
        return 64 * 1024 * 1024          # conservative: v7x per-TensorCore VMEM


def _is_v5e():
    try:
        kind = jax.devices()[0].device_kind.lower()
    except Exception:
        return False
    return ("v5 lite" in kind) or ("v5e" in kind) or ("v5lite" in kind)


def _vmem_limit_or_fail(need_bytes):
    cap = _vmem_capacity_bytes()
    margin = 8 * 1024 * 1024             # headroom for Mosaic scratch/semaphores
    if need_bytes > cap - margin:
        # TODO(synk): switch to a D-tiled halo-DMA path instead of failing.
        raise ValueError(
            f"psf_conv3d: resident working set ({need_bytes >> 20} MiB) exceeds "
            f"VMEM capacity ({cap >> 20} MiB) on this TPU generation.")
    return int(min(cap - margin, max(need_bytes, 32 * 1024 * 1024)))


# ----------------------------------------------------------------------------
# Path A: NC < 128 — flattened (H, W) plane on the lane axis, channel-major.
# ----------------------------------------------------------------------------

def _psf_kernel_spatial_lanes(kern_ref, xpad_ref, out_ref, *, ksize, wp, n_d):
    """One (channel, depth-band) output block.

    kern_ref: (k^3,) f32 PSF taps in SMEM (same PSF for every channel).
    xpad_ref: (1, Dp, L) one channel's replication-padded volume, (H, W)
              flattened with row stride wp; VMEM-resident across the d-steps.
    out_ref : (1, d_band, HWo) output depth-band, flattened with row stride wp
              (the wp-W junk columns per row are sliced off outside).
    """
    d_band = out_ref.shape[1]
    hwo = out_ref.shape[2]
    if n_d == 1:
        d0 = 0                     # static: keeps every sublane offset static
    else:
        d0 = pl.multiple_of(pl.program_id(1) * d_band, d_band)

    # Hoist all tap scalars (one SMEM read each); the multiply below is a
    # vector x scalar vmul, no per-use broadcast.
    taps = [kern_ref[i] for i in range(ksize * ksize * ksize)]

    acc = None
    for kd in range(ksize):
        for kh in range(ksize):
            for kw in range(ksize):
                w = taps[(kd * ksize + kh) * ksize + kw]
                # kd -> sublane-offset load, kh/kw -> lane-offset load: the tap
                # shifts ride the slack vld/XLU slots, VALU does only mul+add.
                win = xpad_ref[0, pl.ds(d0 + kd, d_band),
                               pl.ds(kh * wp + kw, hwo)].astype(jnp.float32)
                term = win * w
                acc = term if acc is None else acc + term
    out_ref[0, :, :] = acc.astype(out_ref.dtype)


def _pick_d_band(D, NC, hwo, itemsize, budget=8 << 20, min_steps=4):
    # Second-to-last block dim must be a multiple of 8 or the full axis.
    cands = [d for d in range(1, D + 1)
             if D % d == 0 and (d % 8 == 0 or d == D)]
    fit = [d for d in cands if 2 * d * hwo * itemsize <= budget] or [min(cands)]
    # Prefer >= 4 total grid steps (>= 2 per v7x TensorCore) when possible.
    multi = [d for d in fit if NC * (D // d) >= min_steps]
    return max(multi or fit)


def _psf_conv3d_spatial_lanes(x, kern_flat, ksize, store_dtype):
    N, C, D, H, W = x.shape
    NC = N * C
    p = (ksize - 1) // 2
    Dp, Hp, Wp = D + 2 * p, H + 2 * p, W + 2 * p

    # Spatial-only replication pad (no transpose, no lane inflation in HBM).
    # One extra replicated bottom H-row keeps all flattened tap windows in-bounds.
    xpad = jnp.pad(x.reshape(NC, D, H, W),
                   ((0, 0), (p, p), (p, p + 1), (p, p)),
                   mode="edge").astype(store_dtype)
    Hq = Hp + 1
    L = Hq * Wp
    xflat = xpad.reshape(NC, Dp, L)
    hwo = H * Wp                          # output rows flattened with stride Wp

    d_band = _pick_d_band(D, NC, hwo, jnp.dtype(x.dtype).itemsize)
    n_d = D // d_band

    in_bytes = Dp * L * jnp.dtype(store_dtype).itemsize
    out_blk_bytes = d_band * hwo * jnp.dtype(x.dtype).itemsize
    single_buffer = (NC == 1)             # input block index constant over grid

    kernel = functools.partial(_psf_kernel_spatial_lanes,
                               ksize=ksize, wp=Wp, n_d=n_d)

    def _run(use_single_buffer):
        n_in_buf = 1 if use_single_buffer else 2
        vmem_limit = _vmem_limit_or_fail(
            n_in_buf * in_bytes + 2 * out_blk_bytes + (2 << 20))
        x_kwargs = ({"pipeline_mode": pl.Buffered(1)}
                    if use_single_buffer else {})
        return pl.pallas_call(
            kernel,
            out_shape=jax.ShapeDtypeStruct((NC, D, hwo), x.dtype),
            grid=(NC, n_d),
            in_specs=[
                pl.BlockSpec(memory_space=pltpu.MemorySpace.SMEM),    # PSF taps
                # Per-channel padded slab; constant along the d axis -> fetched
                # once per channel and kept VMEM-resident across its d-steps.
                pl.BlockSpec((1, Dp, L), lambda nc, db: (nc, 0, 0), **x_kwargs),
            ],
            out_specs=pl.BlockSpec((1, d_band, hwo),
                                   lambda nc, db: (nc, db, 0)),
            compiler_params=pltpu.CompilerParams(
                dimension_semantics=("parallel", "parallel"),
                vmem_limit_bytes=vmem_limit),
        )(kern_flat, xflat)

    if single_buffer:
        try:
            out_flat = _run(True)
        except Exception:                 # this JAX build rejects Buffered(1)
            out_flat = _run(False)
    else:
        out_flat = _run(False)

    # Drop the (Wp - W) junk columns of each flattened row, back to NCDHW.
    out = out_flat.reshape(NC, D, H, Wp)[..., :W]
    return out.reshape(N, C, D, H, W)


# ----------------------------------------------------------------------------
# Path B: NC >= 128 — channel-last, channels on the lane axis (dense stores).
# ----------------------------------------------------------------------------

def _psf_kernel_channels_last(kern_ref, xpad_ref, out_ref, *, ksize, band_h):
    """xpad_ref: (Dp, Hp, Wp, NCp) padded volume (VMEM resident).
       out_ref : (d_blk, H, W, NCp) output depth block for this grid step."""
    d_blk, H, W, NCp = out_ref.shape
    d0 = pl.program_id(0) * d_blk
    if d_blk > 1:
        d0 = pl.multiple_of(d0, d_blk)
    n_h = H // band_h
    n_bands = d_blk * n_h
    taps = [kern_ref[i] for i in range(ksize * ksize * ksize)]

    def band(b, carry):
        dz = b // n_h
        h0 = (b % n_h) * band_h
        acc = None
        for kd in range(ksize):
            for kh in range(ksize):
                for kw in range(ksize):
                    w = taps[(kd * ksize + kh) * ksize + kw]
                    # Tap shifts are load offsets on non-lane axes; the lane
                    # (channel) axis is never shifted and stores stay unmasked.
                    win = xpad_ref[pl.ds(d0 + dz + kd, 1),
                                   pl.ds(h0 + kh, band_h),
                                   pl.ds(kw, W), :].astype(jnp.float32)
                    term = win * w
                    acc = term if acc is None else acc + term
        out_ref[pl.ds(dz, 1), pl.ds(h0, band_h), :, :] = acc.astype(out_ref.dtype)
        return carry

    # Fully unrolled k^3 tap loop; the band loop uses a capped unroll so bundle
    # count / vreg pressure do not explode for many bands.
    jax.lax.fori_loop(0, n_bands, band, 0,
                      unroll=True if n_bands <= 4 else 2)


def _pick_d_blk(D, H, W, NCp, itemsize, budget=8 << 20, min_steps=4):
    divs = [d for d in range(1, D + 1) if D % d == 0]
    fit = [d for d in divs if 2 * d * H * W * NCp * itemsize <= budget] or [1]
    multi = [d for d in fit if (D // d) >= min_steps]
    return max(multi or fit)


def _pick_band_h(H, W, NCp, acc_vreg_budget=12):
    per_row_vregs = max(1, -(-W // 8)) * (NCp // 128)
    best = 1
    for bh in range(1, H + 1):
        if H % bh:
            continue
        if bh * per_row_vregs <= acc_vreg_budget:
            best = bh
    return best


def _psf_conv3d_channels_last(x, kern_flat, ksize, store_dtype):
    N, C, D, H, W = x.shape
    NC = N * C
    p = (ksize - 1) // 2
    Dp, Hp, Wp = D + 2 * p, H + 2 * p, W + 2 * p
    NCp = _round_up(NC, 128)              # small relative waste once NC >= 128

    # Channel-last layout: channels become the (dense) lane axis.
    x_t = jnp.transpose(x.reshape(NC, D, H, W), (1, 2, 3, 0))
    xpad = jnp.pad(x_t, ((p, p), (p, p), (p, p), (0, NCp - NC)),
                   mode="edge").astype(store_dtype)

    d_blk = _pick_d_blk(D, H, W, NCp, jnp.dtype(x.dtype).itemsize)
    band_h = _pick_band_h(H, W, NCp)
    n_steps = D // d_blk

    in_bytes = Dp * Hp * Wp * NCp * jnp.dtype(store_dtype).itemsize
    out_blk_bytes = d_blk * H * W * NCp * jnp.dtype(x.dtype).itemsize

    kernel = functools.partial(_psf_kernel_channels_last,
                               ksize=ksize, band_h=band_h)

    def _run(use_single_buffer):
        n_in_buf = 1 if use_single_buffer else 2
        vmem_limit = _vmem_limit_or_fail(
            n_in_buf * in_bytes + 2 * out_blk_bytes + (2 << 20))
        x_kwargs = ({"pipeline_mode": pl.Buffered(1)}
                    if use_single_buffer else {})
        return pl.pallas_call(
            kernel,
            out_shape=jax.ShapeDtypeStruct((D, H, W, NCp), x.dtype),
            grid=(n_steps,),
            in_specs=[
                pl.BlockSpec(memory_space=pltpu.MemorySpace.SMEM),    # PSF taps
                # Whole padded volume, constant block index -> fetched once;
                # single-buffered so the dominant VMEM consumer is not doubled.
                pl.BlockSpec((Dp, Hp, Wp, NCp), lambda i: (0, 0, 0, 0),
                             **x_kwargs),
            ],
            out_specs=pl.BlockSpec((d_blk, H, W, NCp),
                                   lambda i: (i, 0, 0, 0)),
            compiler_params=pltpu.CompilerParams(
                dimension_semantics=("parallel",),
                vmem_limit_bytes=vmem_limit),
        )(kern_flat, xpad)

    try:
        out_t = _run(True)
    except Exception:                     # this JAX build rejects Buffered(1)
        out_t = _run(False)

    out = jnp.transpose(out_t[..., :NC], (3, 0, 1, 2))
    return out.reshape(N, C, D, H, W)


# ----------------------------------------------------------------------------
# Public wrapper (forward pass of PSFConvolutionLayer3D).
# ----------------------------------------------------------------------------

def psf_conv3d(x, kernel_psf, *, compute_dtype=None):
    """x: (N, C, D, H, W); kernel_psf: (k, k, k) PSF shared by every channel.

    compute_dtype: optional *storage* dtype for the padded volume inside the
    kernel (e.g. jnp.bfloat16 on v6e/v7x; accumulation stays f32).  Default
    keeps x.dtype for exact parity with the PyTorch module; bf16 is rejected
    on v5e.
    """
    N, C, D, H, W = x.shape
    k = int(kernel_psf.shape[0])
    assert kernel_psf.shape == (k, k, k), "cubic PSF expected"
    assert k % 2 == 1, "odd PSF size expected (same-shape output)"

    if compute_dtype is None:
        store_dtype = x.dtype
    else:
        store_dtype = jnp.dtype(compute_dtype)
        if store_dtype == jnp.dtype(jnp.bfloat16) and _is_v5e():
            raise ValueError("bf16 storage path is not supported on TPU v5e "
                             "(no bf16 VPU); use float32.")

    kern_flat = jnp.asarray(kernel_psf, jnp.float32).reshape(-1)

    if N * C >= 128:
        return _psf_conv3d_channels_last(x, kern_flat, k, store_dtype)
    return _psf_conv3d_spatial_lanes(x, kern_flat, k, store_dtype)


# ----------------------------------------------------------------------------
# Reference + tests.
# ----------------------------------------------------------------------------

def _reference(x, kernel_psf):
    """Plain-JAX reference: edge pad + VALID depthwise cross-correlation, same
    semantics as ReplicationPad3d + Conv3d(groups=C, bias=False)."""
    N, C, D, H, W = x.shape
    k = kernel_psf.shape[0]
    p = (k - 1) // 2
    xpad = jnp.pad(x, ((0, 0), (0, 0), (p, p), (p, p), (p, p)), mode="edge")
    w = jnp.broadcast_to(kernel_psf, (C, 1, k, k, k)).astype(jnp.float32)
    return jax.lax.conv_general_dilated(
        xpad, w,
        window_strides=(1, 1, 1),
        padding="VALID",
        dimension_numbers=("NCDHW", "OIDHW", "NCDHW"),
        feature_group_count=C,
    )


if __name__ == "__main__":
    root = jax.random.PRNGKey(0)

    def run_case(idx, N, C, D, H, W, K, compute_dtype=None,
                 rtol=1e-5, atol=1e-5):
        kx, kk = jax.random.split(jax.random.fold_in(root, idx))
        x = jax.random.normal(kx, (N, C, D, H, W), dtype=jnp.float32)
        psf = jax.random.uniform(kk, (K, K, K), dtype=jnp.float32)
        psf = psf / jnp.sum(psf)                      # PSF normalized to sum 1
        ref = jax.block_until_ready(_reference(x, psf))
        out = jax.block_until_ready(
            psf_conv3d(x, psf, compute_dtype=compute_dtype))
        np.testing.assert_allclose(np.asarray(out), np.asarray(ref),
                                   rtol=rtol, atol=atol)

    # Small-NC path (NC=6): spatial plane on lanes, no channel inflation.
    run_case(0, 2, 3, 8, 16, 16, 3)
    # NC=1 (single resident slab -> Buffered(1) input), K=5, ragged spatial.
    run_case(1, 1, 1, 6, 12, 10, 5)
    # Large-NC path (NC=128): channel-last lanes, dense unmasked stores.
    run_case(2, 1, 128, 4, 8, 8, 3)
    # Opt-in bf16 storage path (f32 accumulation) — not on v5e.
    if not _is_v5e():
        run_case(3, 2, 3, 8, 16, 16, 3,
                 compute_dtype=jnp.bfloat16, rtol=5e-2, atol=2e-2)

    print("KERNEL_OK")
</pallas_src>

<mosaic_0001>
module attributes {stable_mosaic.version = 11 : i64} {
  func.func @_psf_kernel_spatial_lanes(%arg0: i32, %arg1: i32, %arg2: memref<27xf32, #tpu.memory_space<smem>>, %arg3: memref<1x10x342xf32, #tpu.memory_space<vmem>>, %arg4: memref<1x8x288xf32, #tpu.memory_space<vmem>>) attributes {dimension_semantics = [#tpu.dimension_semantics<parallel>, #tpu.dimension_semantics<parallel>], iteration_bounds = array<i64: 6, 1>, scalar_prefetch = 0 : i64, scratch_operands = 0 : i64, tpu.core_type = #tpu.core_type<tc>, window_params = [{transform_indices = @transform_0, window_bounds = array<i64: 27>}, {transform_indices = @transform_1, window_bounds = array<i64: 1, 10, 342>}, {transform_indices = @transform_2, window_bounds = array<i64: 1, 8, 288>}]} {
    %c0 = arith.constant 0 : index
    %0 = memref.load %arg2[%c0] : memref<27xf32, #tpu.memory_space<smem>>
    %c1 = arith.constant 1 : index
    %1 = memref.load %arg2[%c1] : memref<27xf32, #tpu.memory_space<smem>>
    %c2 = arith.constant 2 : index
    %2 = memref.load %arg2[%c2] : memref<27xf32, #tpu.memory_space<smem>>
    %c3 = arith.constant 3 : index
    %3 = memref.load %arg2[%c3] : memref<27xf32, #tpu.memory_space<smem>>
    %c4 = arith.constant 4 : index
    %4 = memref.load %arg2[%c4] : memref<27xf32, #tpu.memory_space<smem>>
    %c5 = arith.constant 5 : index
    %5 = memref.load %arg2[%c5] : memref<27xf32, #tpu.memory_space<smem>>
    %c6 = arith.constant 6 : index
    %6 = memref.load %arg2[%c6] : memref<27xf32, #tpu.memory_space<smem>>
    %c7 = arith.constant 7 : index
    %7 = memref.load %arg2[%c7] : memref<27xf32, #tpu.memory_space<smem>>
    %c8 = arith.constant 8 : index
    %8 = memref.load %arg2[%c8] : memref<27xf32, #tpu.memory_space<smem>>
    %c9 = arith.constant 9 : index
    %9 = memref.load %arg2[%c9] : memref<27xf32, #tpu.memory_space<smem>>
    %c10 = arith.constant 10 : index
    %10 = memref.load %arg2[%c10] : memref<27xf32, #tpu.memory_space<smem>>
    %c11 = arith.constant 11 : index
    %11 = memref.load %arg2[%c11] : memref<27xf32, #tpu.memory_space<smem>>
    %c12 = arith.constant 12 : index
    %12 = memref.load %arg2[%c12] : memref<27xf32, #tpu.memory_space<smem>>
    %c13 = arith.constant 13 : index
    %13 = memref.load %arg2[%c13] : memref<27xf32, #tpu.memory_space<smem>>
    %c14 = arith.constant 14 : index
    %14 = memref.load %arg2[%c14] : memref<27xf32, #tpu.memory_space<smem>>
    %c15 = arith.constant 15 : index
    %15 = memref.load %arg2[%c15] : memref<27xf32, #tpu.memory_space<smem>>
    %c16 = arith.constant 16 : index
    %16 = memref.load %arg2[%c16] : memref<27xf32, #tpu.memory_space<smem>>
    %c17 = arith.constant 17 : index
    %17 = memref.load %arg2[%c17] : memref<27xf32, #tpu.memory_space<smem>>
    %c18 = arith.constant 18 : index
    %18 = memref.load %arg2[%c18] : memref<27xf32, #tpu.memory_space<smem>>
    %c19 = arith.constant 19 : index
    %19 = memref.load %arg2[%c19] : memref<27xf32, #tpu.memory_space<smem>>
    %c20 = arith.constant 20 : index
    %20 = memref.load %arg2[%c20] : memref<27xf32, #tpu.memory_space<smem>>
    %c21 = arith.constant 21 : index
    %21 = memref.load %arg2[%c21] : memref<27xf32, #tpu.memory_space<smem>>
    %c22 = arith.constant 22 : index
    %22 = memref.load %arg2[%c22] : memref<27xf32, #tpu.memory_space<smem>>
    %c23 = arith.constant 23 : index
    %23 = memref.load %arg2[%c23] : memref<27xf32, #tpu.memory_space<smem>>
    %c24 = arith.constant 24 : index
    %24 = memref.load %arg2[%c24] : memref<27xf32, #tpu.memory_space<smem>>
    %c25 = arith.constant 25 : index
    %25 = memref.load %arg2[%c25] : memref<27xf32, #tpu.memory_space<smem>>
    %c26 = arith.constant 26 : index
    %26 = memref.load %arg2[%c26] : memref<27xf32, #tpu.memory_space<smem>>
    %c0_0 = arith.constant 0 : index
    %c0_1 = arith.constant 0 : index
    %c0_2 = arith.constant 0 : index
    %27 = vector.load %arg3[%c0_0, %c0_1, %c0_2] : memref<1x10x342xf32, #tpu.memory_space<vmem>>, vector<1x8x288xf32>
    %28 = vector.shape_cast %27 : vector<1x8x288xf32> to vector<8x288xf32>
    %29 = vector.broadcast %0 : f32 to vector<8x288xf32>
    %30 = arith.mulf %28, %29 : vector<8x288xf32>
    %c0_3 = arith.constant 0 : index
    %c0_4 = arith.constant 0 : index
    %c1_5 = arith.constant 1 : index
    %31 = vector.load %arg3[%c0_3, %c0_4, %c1_5] : memref<1x10x342xf32, #tpu.memory_space<vmem>>, vector<1x8x288xf32>
    %32 = vector.shape_cast %31 : vector<1x8x288xf32> to vector<8x288xf32>
    %33 = vector.broadcast %1 : f32 to vector<8x288xf32>
    %34 = arith.mulf %32, %33 : vector<8x288xf32>
    %35 = arith.addf %30, %34 : vector<8x288xf32>
    %c0_6 = arith.constant 0 : index
    %c0_7 = arith.constant 0 : index
    %c2_8 = arith.constant 2 : index
    %36 = vector.load %arg3[%c0_6, %c0_7, %c2_8] : memref<1x10x342xf32, #tpu.memory_space<vmem>>, vector<1x8x288xf32>
    %37 = vector.shape_cast %36 : vector<1x8x288xf32> to vector<8x288xf32>
    %38 = vector.broadcast %2 : f32 to vector<8x288xf32>
    %39 = arith.mulf %37, %38 : vector<8x288xf32>
    %40 = arith.addf %35, %39 : vector<8x288xf32>
    %c0_9 = arith.constant 0 : index
    %c0_10 = arith.constant 0 : index
    %c18_11 = arith.constant 18 : index
    %41 = vector.load %arg3[%c0_9, %c0_10, %c18_11] : memref<1x10x342xf32, #tpu.memory_space<vmem>>, vector<1x8x288xf32>
    %42 = vector.shape_cast %41 : vector<1x8x288xf32> to vector<8x288xf32>
    %43 = vector.broadcast %3 : f32 to vector<8x288xf32>
    %44 = arith.mulf %42, %43 : vector<8x288xf32>
    %45 = arith.addf %40, %44 : vector<8x288xf32>
    %c0_12 = arith.constant 0 : index
    %c0_13 = arith.constant 0 : index
    %c19_14 = arith.constant 19 : index
    %46 = vector.load %arg3[%c0_12, %c0_13, %c19_14] : memref<1x10x342xf32, #tpu.memory_space<vmem>>, vector<1x8x288xf32>
    %47 = vector.shape_cast %46 : vector<1x8x288xf32> to vector<8x288xf32>
    %48 = vector.broadcast %4 : f32 to vector<8x288xf32>
    %49 = arith.mulf %47, %48 : vector<8x288xf32>
    %50 = arith.addf %45, %49 : vector<8x288xf32>
    %c0_15 = arith.constant 0 : index
    %c0_16 = arith.constant 0 : index
    %c20_17 = arith.constant 20 : index
    %51 = vector.load %arg3[%c0_15, %c0_16, %c20_17] : memref<1x10x342xf32, #tpu.memory_space<vmem>>, vector<1x8x288xf32>
    %52 = vector.shape_cast %51 : vector<1x8x288xf32> to vector<8x288xf32>
    %53 = vector.broadcast %5 : f32 to vector<8x288xf32>
    %54 = arith.mulf %52, %53 : vector<8x288xf32>
    %55 = arith.addf %50, %54 : vector<8x288xf32>
    %c0_18 = arith.constant 0 : index
    %c0_19 = arith.constant 0 : index
    %c36 = arith.constant 36 : index
    %56 = vector.load %arg3[%c0_18, %c0_19, %c36] : memref<1x10x342xf32, #tpu.memory_space<vmem>>, vector<1x8x288xf32>
    %57 = vector.shape_cast %56 : vector<1x8x288xf32> to vector<8x288xf32>
    %58 = vector.broadcast %6 : f32 to vector<8x288xf32>
    %59 = arith.mulf %57, %58 : vector<8x288xf32>
    %60 = arith.addf %55, %59 : vector<8x288xf32>
    %c0_20 = arith.constant 0 : index
    %c0_21 = arith.constant 0 : index
    %c37 = arith.constant 37 : index
    %61 = vector.load %arg3[%c0_20, %c0_21, %c37] : memref<1x10x342xf32, #tpu.memory_space<vmem>>, vector<1x8x288xf32>
    %62 = vector.shape_cast %61 : vector<1x8x288xf32> to vector<8x288xf32>
    %63 = vector.broadcast %7 : f32 to vector<8x288xf32>
    %64 = arith.mulf %62, %63 : vector<8x288xf32>
    %65 = arith.addf %60, %64 : vector<8x288xf32>
    %c0_22 = arith.constant 0 : index
    %c0_23 = arith.constant 0 : index
    %c38 = arith.constant 38 : index
    %66 = vector.load %arg3[%c0_22, %c0_23, %c38] : memref<1x10x342xf32, #tpu.memory_space<vmem>>, vector<1x8x288xf32>
    %67 = vector.shape_cast %66 : vector<1x8x288xf32> to vector<8x288xf32>
    %68 = vector.broadcast %8 : f32 to vector<8x288xf32>
    %69 = arith.mulf %67, %68 : vector<8x288xf32>
    %70 = arith.addf %65, %69 : vector<8x288xf32>
    %c0_24 = arith.constant 0 : index
    %c1_25 = arith.constant 1 : index
    %c0_26 = arith.constant 0 : index
    %71 = vector.load %arg3[%c0_24, %c1_25, %c0_26] : memref<1x10x342xf32, #tpu.memory_space<vmem>>, vector<1x8x288xf32>
    %72 = vector.shape_cast %71 : vector<1x8x288xf32> to vector<8x288xf32>
    %73 = vector.broadcast %9 : f32 to vector<8x288xf32>
    %74 = arith.mulf %72, %73 : vector<8x288xf32>
    %75 = arith.addf %70, %74 : vector<8x288xf32>
    %c0_27 = arith.constant 0 : index
    %c1_28 = arith.constant 1 : index
    %c1_29 = arith.constant 1 : index
    %76 = vector.load %arg3[%c0_27, %c1_28, %c1_29] : memref<1x10x342xf32, #tpu.memory_space<vmem>>, vector<1x8x288xf32>
    %77 = vector.shape_cast %76 : vector<1x8x288xf32> to vector<8x288xf32>
    %78 = vector.broadcast %10 : f32 to vector<8x288xf32>
    %79 = arith.mulf %77, %78 : vector<8x288xf32>
    %80 = arith.addf %75, %79 : vector<8x288xf32>
    %c0_30 = arith.constant 0 : index
    %c1_31 = arith.constant 1 : index
    %c2_32 = arith.constant 2 : index
    %81 = vector.load %arg3[%c0_30, %c1_31, %c2_32] : memref<1x10x342xf32, #tpu.memory_space<vmem>>, vector<1x8x288xf32>
    %82 = vector.shape_cast %81 : vector<1x8x288xf32> to vector<8x288xf32>
    %83 = vector.broadcast %11 : f32 to vector<8x288xf32>
    %84 = arith.mulf %82, %83 : vector<8x288xf32>
    %85 = arith.addf %80, %84 : vector<8x288xf32>
    %c0_33 = arith.constant 0 : index
    %c1_34 = arith.constant 1 : index
    %c18_35 = arith.constant 18 : index
    %86 = vector.load %arg3[%c0_33, %c1_34, %c18_35] : memref<1x10x342xf32, #tpu.memory_space<vmem>>, vector<1x8x288xf32>
    %87 = vector.shape_cast %86 : vector<1x8x288xf32> to vector<8x288xf32>
    %88 = vector.broadcast %12 : f32 to vector<8x288xf32>
    %89 = arith.mulf %87, %88 : vector<8x288xf32>
    %90 = arith.addf %85, %89 : vector<8x288xf32>
    %c0_36 = arith.constant 0 : index
    %c1_37 = arith.constant 1 : index
    %c19_38 = arith.constant 19 : index
    %91 = vector.load %arg3[%c0_36, %c1_37, %c19_38] : memref<1x10x342xf32, #tpu.memory_space<vmem>>, vector<1x8x288xf32>
    %92 = vector.shape_cast %91 : vector<1x8x288xf32> to vector<8x288xf32>
    %93 = vector.broadcast %13 : f32 to vector<8x288xf32>
    %94 = arith.mulf %92, %93 : vector<8x288xf32>
    %95 = arith.addf %90, %94 : vector<8x288xf32>
    %c0_39 = arith.constant 0 : index
    %c1_40 = arith.constant 1 : index
    %c20_41 = arith.constant 20 : index
    %96 = vector.load %arg3[%c0_39, %c1_40, %c20_41] : memref<1x10x342xf32, #tpu.memory_space<vmem>>, vector<1x8x288xf32>
    %97 = vector.shape_cast %96 : vector<1x8x288xf32> to vector<8x288xf32>
    %98 = vector.broadcast %14 : f32 to vector<8x288xf32>
    %99 = arith.mulf %97, %98 : vector<8x288xf32>
    %100 = arith.addf %95, %99 : vector<8x288xf32>
    %c0_42 = arith.constant 0 : index
    %c1_43 = arith.constant 1 : index
    %c36_44 = arith.constant 36 : index
    %101 = vector.load %arg3[%c0_42, %c1_43, %c36_44] : memref<1x10x342xf32, #tpu.memory_space<vmem>>, vector<1x8x288xf32>
    %102 = vector.shape_cast %101 : vector<1x8x288xf32> to vector<8x288xf32>
    %103 = vector.broadcast %15 : f32 to vector<8x288xf32>
    %104 = arith.mulf %102, %103 : vector<8x288xf32>
    %105 = arith.addf %100, %104 : vector<8x288xf32>
    %c0_45 = arith.constant 0 : index
    %c1_46 = arith.constant 1 : index
    %c37_47 = arith.constant 37 : index
    %106 = vector.load %arg3[%c0_45, %c1_46, %c37_47] : memref<1x10x342xf32, #tpu.memory_space<vmem>>, vector<1x8x288xf32>
    %107 = vector.shape_cast %106 : vector<1x8x288xf32> to vector<8x288xf32>
    %108 = vector.broadcast %16 : f32 to vector<8x288xf32>
    %109 = arith.mulf %107, %108 : vector<8x288xf32>
    %110 = arith.addf %105, %109 : vector<8x288xf32>
    %c0_48 = arith.constant 0 : index
    %c1_49 = arith.constant 1 : index
    %c38_50 = arith.constant 38 : index
    %111 = vector.load %arg3[%c0_48, %c1_49, %c38_50] : memref<1x10x342xf32, #tpu.memory_space<vmem>>, vector<1x8x288xf32>
    %112 = vector.shape_cast %111 : vector<1x8x288xf32> to vector<8x288xf32>
    %113 = vector.broadcast %17 : f32 to vector<8x288xf32>
    %114 = arith.mulf %112, %113 : vector<8x288xf32>
    %115 = arith.addf %110, %114 : vector<8x288xf32>
    %c0_51 = arith.constant 0 : index
    %c2_52 = arith.constant 2 : index
    %c0_53 = arith.constant 0 : index
    %116 = vector.load %arg3[%c0_51, %c2_52, %c0_53] : memref<1x10x342xf32, #tpu.memory_space<vmem>>, vector<1x8x288xf32>
    %117 = vector.shape_cast %116 : vector<1x8x288xf32> to vector<8x288xf32>
    %118 = vector.broadcast %18 : f32 to vector<8x288xf32>
    %119 = arith.mulf %117, %118 : vector<8x288xf32>
    %120 = arith.addf %115, %119 : vector<8x288xf32>
    %c0_54 = arith.constant 0 : index
    %c2_55 = arith.constant 2 : index
    %c1_56 = arith.constant 1 : index
    %121 = vector.load %arg3[%c0_54, %c2_55, %c1_56] : memref<1x10x342xf32, #tpu.memory_space<vmem>>, vector<1x8x288xf32>
    %122 = vector.shape_cast %121 : vector<1x8x288xf32> to vector<8x288xf32>
    %123 = vector.broadcast %19 : f32 to vector<8x288xf32>
    %124 = arith.mulf %122, %123 : vector<8x288xf32>
    %125 = arith.addf %120, %124 : vector<8x288xf32>
    %c0_57 = arith.constant 0 : index
    %c2_58 = arith.constant 2 : index
    %c2_59 = arith.constant 2 : index
    %126 = vector.load %arg3[%c0_57, %c2_58, %c2_59] : memref<1x10x342xf32, #tpu.memory_space<vmem>>, vector<1x8x288xf32>
    %127 = vector.shape_cast %126 : vector<1x8x288xf32> to vector<8x288xf32>
    %128 = vector.broadcast %20 : f32 to vector<8x288xf32>
    %129 = arith.mulf %127, %128 : vector<8x288xf32>
    %130 = arith.addf %125, %129 : vector<8x288xf32>
    %c0_60 = arith.constant 0 : index
    %c2_61 = arith.constant 2 : index
    %c18_62 = arith.constant 18 : index
    %131 = vector.load %arg3[%c0_60, %c2_61, %c18_62] : memref<1x10x342xf32, #tpu.memory_space<vmem>>, vector<1x8x288xf32>
    %132 = vector.shape_cast %131 : vector<1x8x288xf32> to vector<8x288xf32>
    %133 = vector.broadcast %21 : f32 to vector<8x288xf32>
    %134 = arith.mulf %132, %133 : vector<8x288xf32>
    %135 = arith.addf %130, %134 : vector<8x288xf32>
    %c0_63 = arith.constant 0 : index
    %c2_64 = arith.constant 2 : index
    %c19_65 = arith.constant 19 : index
    %136 = vector.load %arg3[%c0_63, %c2_64, %c19_65] : memref<1x10x342xf32, #tpu.memory_space<vmem>>, vector<1x8x288xf32>
    %137 = vector.shape_cast %136 : vector<1x8x288xf32> to vector<8x288xf32>
    %138 = vector.broadcast %22 : f32 to vector<8x288xf32>
    %139 = arith.mulf %137, %138 : vector<8x288xf32>
    %140 = arith.addf %135, %139 : vector<8x288xf32>
    %c0_66 = arith.constant 0 : index
    %c2_67 = arith.constant 2 : index
    %c20_68 = arith.constant 20 : index
    %141 = vector.load %arg3[%c0_66, %c2_67, %c20_68] : memref<1x10x342xf32, #tpu.memory_space<vmem>>, vector<1x8x288xf32>
    %142 = vector.shape_cast %141 : vector<1x8x288xf32> to vector<8x288xf32>
    %143 = vector.broadcast %23 : f32 to vector<8x288xf32>
    %144 = arith.mulf %142, %143 : vector<8x288xf32>
    %145 = arith.addf %140, %144 : vector<8x288xf32>
    %c0_69 = arith.constant 0 : index
    %c2_70 = arith.constant 2 : index
    %c36_71 = arith.constant 36 : index
    %146 = vector.load %arg3[%c0_69, %c2_70, %c36_71] : memref<1x10x342xf32, #tpu.memory_space<vmem>>, vector<1x8x288xf32>
    %147 = vector.shape_cast %146 : vector<1x8x288xf32> to vector<8x288xf32>
    %148 = vector.broadcast %24 : f32 to vector<8x288xf32>
    %149 = arith.mulf %147, %148 : vector<8x288xf32>
    %150 = arith.addf %145, %149 : vector<8x288xf32>
    %c0_72 = arith.constant 0 : index
    %c2_73 = arith.constant 2 : index
    %c37_74 = arith.constant 37 : index
    %151 = vector.load %arg3[%c0_72, %c2_73, %c37_74] : memref<1x10x342xf32, #tpu.memory_space<vmem>>, vector<1x8x288xf32>
    %152 = vector.shape_cast %151 : vector<1x8x288xf32> to vector<8x288xf32>
    %153 = vector.broadcast %25 : f32 to vector<8x288xf32>
    %154 = arith.mulf %152, %153 : vector<8x288xf32>
    %155 = arith.addf %150, %154 : vector<8x288xf32>
    %c0_75 = arith.constant 0 : index
    %c2_76 = arith.constant 2 : index
    %c38_77 = arith.constant 38 : index
    %156 = vector.load %arg3[%c0_75, %c2_76, %c38_77] : memref<1x10x342xf32, #tpu.memory_space<vmem>>, vector<1x8x288xf32>
    %157 = vector.shape_cast %156 : vector<1x8x288xf32> to vector<8x288xf32>
    %158 = vector.broadcast %26 : f32 to vector<8x288xf32>
    %159 = arith.mulf %157, %158 : vector<8x288xf32>
    %160 = arith.addf %155, %159 : vector<8x288xf32>
    %c0_78 = arith.constant 0 : index
    %c0_79 = arith.constant 0 : index
    %c0_80 = arith.constant 0 : index
    %161 = vector.load %arg4[%c0_78, %c0_79, %c0_80] : memref<1x8x288xf32, #tpu.memory_space<vmem>>, vector<1x8x288xf32>
    %162 = vector.shape_cast %161 : vector<1x8x288xf32> to vector<8x288xf32>
    %163 = vector.shape_cast %160 : vector<8x288xf32> to vector<1x8x288xf32>
    tpu.vector_store %arg4[%c0_78, %c0_79, %c0_80], %163 {strides = array<i32>} : memref<1x8x288xf32, #tpu.memory_space<vmem>>, vector<1x8x288xf32>,
    return
  }
  func.func @transform_0(%arg0: i32, %arg1: i32) -> i32 {
    %c0_i32 = arith.constant 0 : i32
    %c0_i32_0 = arith.constant 0 : i32
    return %c0_i32 : i32
  }
  func.func @transform_1(%arg0: i32, %arg1: i32) -> (i32, i32, i32) {
    %c0_i32 = arith.constant 0 : i32
    %c0_i32_0 = arith.constant 0 : i32
    %c0_i32_1 = arith.constant 0 : i32
    return %arg0, %c0_i32, %c0_i32_0 : i32, i32, i32
  }
  func.func @transform_2(%arg0: i32, %arg1: i32) -> (i32, i32, i32) {
    %c0_i32 = arith.constant 0 : i32
    %c0_i32_0 = arith.constant 0 : i32
    return %arg0, %arg1, %c0_i32 : i32, i32, i32
  }
}

</mosaic_0001>

<llo_original>
// kernel: tpu_custom_call.1
$region0: #{tpu_custom_call.1}
  #allocation0 [shape = 'u32[]', space=smem, size = 0x4, offset = 0x4, fixed_abs, tag = 'smem constant byte address 0x4 - core index']
  #allocation1 [shape = 'u32[144,128]{1,0:T(1,128)}', space=vmem, size = 0x12000, scoped, tag = 'internal scratch']
  %s0 = inlined_call_operand.vmem [shape: f32[27], index: 0, kind: input, shape index: {}]
  %s1 = inlined_call_operand.vmem [shape: f32[6,10,342], index: 1, kind: input, shape index: {}]
  %s2 = inlined_call_operand.hbm [shape: f32[6,8,288], index: 2, kind: output, shape index: {}]
  %s3 = sld [smem:[#allocation0]]
  $region45: #{tpu_custom_call.1} parent=0
    _
  %s5 = ssub.s32 1, %s3
  %s6 = scalar_select 0, %s5, %s3
  $region1: #{tpu_custom_call.1} parent=0
    #allocation2 [shape = 'u8[512]{0}', space=smem, size = 0x200, scoped, tag = 'input window, operand 0, single buffered']
    #allocation3 [shape = 's32[2]{0}', space=sflag, size = 0x8, scoped, tag = 'scoped memory for tpu_custom_call.1']
    #allocation4 [shape = 's32[2]{0}', space=sflag, size = 0x8, scoped, tag = 'scoped memory for tpu_custom_call.1']
    #allocation5 [shape = 'u8[24576]{0}', space=vmem, size = 0x6000, scoped, tag = 'output window, operand 0']
    %7 = vsyncpa [#allocation4], 0
    %8 = vsyncpa [#allocation3], 0
    %s9 = scalar_lea.sflag [#allocation3], 1
    %10 = vsyncpa %s9, 0
    loop: start=0, step=1, limit=8
    $region2: #{tpu_custom_call.1} parent=1 // loop_pre_header
      _
    $region3: #{tpu_custom_call.1} parent=1 // loop_header
      %s12 = sphi 0, %s16
      %p13 = scmp.ge.s32.totalorder %s12, 8
      %s19 = sphi 0, %s31
      %s20 = sphi 0, %s27
      %s21 = sphi 0, %s19
      %s22 = sphi 0, %s20
      %s23 = sphi 0, %s21
      %s24 = sphi 0, %s22
      %s32 = sphi 0, %s32
      %s34 = sphi 0, %s32
      %s35 = sphi 0, %s34
      %s49 = sphi 0, %s35
      %s55 = sphi 0, %s57
      %s58 = sphi 0, %s55
      %s59 = sphi 0, %s58
      %s75 = sphi 0, %s59
      %s83 = sphi 0, %s85
      %s86 = sphi 0, %s83
      %s87 = sphi 0, %s86
      %s103 = sphi 0, %s87
    $region4: #{tpu_custom_call.1} parent=1 // loop_header_branch
      %15 = sbr.rel (%p13) target = $region8
    $region5: #{tpu_custom_call.1} parent=1 // loop_body
      %s17 = ssub.s32 %s12, 1
      %s18 = ssub.s32 %s12, 2
      %s25 = sadd.s32 1, %s20
      %p26 = scmp.ge.s32.totalorder %s25, 1
      %s27 = scalar_select %p26, 0, %s25
      %s28 = sadd.s32 1, %s19
      %s29 = scalar_select %p26, %s28, %s19
      %p30 = scmp.ge.s32.totalorder %s29, 6
      %s31 = scalar_select %p30, 0, %s29
      %s33 = sadd.s32 %s32, 1
      %p36 = scmp.eq.s32.totalorder %s12, 5
      %p37 = scmp.ne.s32.totalorder %s32, %s34
      %p38 = scmp.eq.s32.totalorder %s12, 0
      %p39 = por %p37, %p38
      %p40 = scmp.ne.s32.totalorder %s32, %s34
      %p41 = scmp.eq.s32.totalorder %s17, 5
      %p42 = por %p40, %p41
      %p43 = scmp.ne.s32.totalorder %s34, %s35
      %p44 = scmp.eq.s32.totalorder %s17, 0
      %p45 = por %p43, %p44
      %p46 = scmp.ne.s32.totalorder %s34, %s35
      %p47 = scmp.eq.s32.totalorder %s18, 5
      %p48 = por %p46, %p47
      %p50 = scmp.ne.s32.totalorder %s35, %s49
      %p51 = scmp.eq.s32.totalorder %s18, 0
      %p52 = por %p50, %p51
      %s53 = ssub.s32 %s19, %s31
      %p54 = scmp.eq.s32.totalorder %s53, 0
      %s56 = sadd.s32 %s55, 1
      %s57 = scalar_select %p54, %s55, %s56
      %p60 = pneg %p54
      %p61 = scmp.eq.s32.totalorder %s12, 5
      %p62 = por %p60, %p61
      %p63 = scmp.ne.s32.totalorder %s55, %s58
      %p64 = scmp.eq.s32.totalorder %s12, 0
      %p65 = por %p63, %p64
      %p66 = scmp.ne.s32.totalorder %s55, %s58
      %p67 = scmp.eq.s32.totalorder %s17, 5
      %p68 = por %p66, %p67
      %p69 = scmp.ne.s32.totalorder %s58, %s59
      %p70 = scmp.eq.s32.totalorder %s17, 0
      %p71 = por %p69, %p70
      %p72 = scmp.ne.s32.totalorder %s58, %s59
      %p73 = scmp.eq.s32.totalorder %s18, 5
      %p74 = por %p72, %p73
      %p76 = scmp.ne.s32.totalorder %s59, %s75
      %p77 = scmp.eq.s32.totalorder %s18, 0
      %p78 = por %p76, %p77
      %s79 = ssub.s32 %s19, %s31
      %s80 = ssub.s32 %s20, %s27
      %s81 = sor.u32 %s79, %s80
      %p82 = scmp.eq.s32.totalorder %s81, 0
      %s84 = sadd.s32 %s83, 1
      %s85 = scalar_select %p82, %s83, %s84
      %p88 = pneg %p82
      %p89 = scmp.eq.s32.totalorder %s12, 5
      %p90 = por %p88, %p89
      %p91 = scmp.ne.s32.totalorder %s83, %s86
      %p92 = scmp.eq.s32.totalorder %s12, 0
      %p93 = por %p91, %p92
      %p94 = scmp.ne.s32.totalorder %s83, %s86
      %p95 = scmp.eq.s32.totalorder %s17, 5
      %p96 = por %p94, %p95
      %p97 = scmp.ne.s32.totalorder %s86, %s87
      %p98 = scmp.eq.s32.totalorder %s17, 0
      %p99 = por %p97, %p98
      %p100 = scmp.ne.s32.totalorder %s86, %s87
      %p101 = scmp.eq.s32.totalorder %s18, 5
      %p102 = por %p100, %p101
      %p104 = scmp.ne.s32.totalorder %s87, %s103
      %p105 = scmp.eq.s32.totalorder %s18, 0
      %p106 = por %p104, %p105
      %p107 = scmp.le.s32.totalorder 1, %s12
      %p108 = scmp.lt.s32.totalorder %s12, 7
      %p109 = pnand %p107, %p108
      %p110 = pneg %p109
      // Predicated region
      $region9: #{tpu_custom_call.1} parent=5 // pred_check
        _
      $region10: #{tpu_custom_call.1} parent=5 // pred_check_branch
        %112 = sbr.rel (%p109) target = $region12
      $region11: #{tpu_custom_call.1} parent=5 // pred_region
        %s113 = ssub.s32 %s12, 1
        // Predicated region
        $region13: #{tpu_custom_call.1} parent=11 // pred_check
          %p114 = pneg %p45
        $region14: #{tpu_custom_call.1} parent=11 // pred_check_branch
          %116 = sbr.rel (%p114) target = $region16
        $region15: #{tpu_custom_call.1} parent=11 // pred_region
          %s118 = ssub.s32 16, 16
          %119 = vsyncadd [#allocation4], %s118
          %s121 = sshll.u32 %s0, 4
          %s122 = int_to_ptr.vmem [resolvable:$true] %s121
          %124 = dma.vmem_to_smem %s122, 16, [#allocation2], [#allocation4]
        $region16: #{tpu_custom_call.1} parent=11 // pred_fallthru
          _
      $region12: #{tpu_custom_call.1} parent=5 // pred_fallthru
        _
      %p125 = scmp.lt.s32.totalorder %s12, 6
      // Predicated region
      $region17: #{tpu_custom_call.1} parent=5 // pred_check
        %p126 = pneg %p125
      $region18: #{tpu_custom_call.1} parent=5 // pred_check_branch
        %128 = sbr.rel (%p126) target = $region20
      $region19: #{tpu_custom_call.1} parent=5 // pred_region
        // Predicated region
        $region21: #{tpu_custom_call.1} parent=19 // pred_check
          %p129 = pneg %p65
        $region22: #{tpu_custom_call.1} parent=19 // pred_check_branch
          %131 = sbr.rel (%p129) target = $region24
        $region23: #{tpu_custom_call.1} parent=19 // pred_region
          %p132 = scmp.lt.s32.totalorder %s19, 5
          %s133 = scalar_select %p132, %s19, 5
          %s134 = smul.addr %s133, 6
          %s135 = smul.addr %s134, 8
          %s136 = scalar_lea.vmem %s1, %s135
        $region24: #{tpu_custom_call.1} parent=19 // pred_fallthru
          _
      $region20: #{tpu_custom_call.1} parent=5 // pred_fallthru
        _
      %p137 = scmp.le.s32.totalorder 1, %s12
      %p138 = scmp.lt.s32.totalorder %s12, 7
      %p139 = pnand %p137, %p138
      %p140 = pneg %p139
      // Predicated region
      $region25: #{tpu_custom_call.1} parent=5 // pred_check
        _
      $region26: #{tpu_custom_call.1} parent=5 // pred_check_branch
        %142 = sbr.rel (%p139) target = $region28
      $region27: #{tpu_custom_call.1} parent=5 // pred_region
        %s143 = ssub.s32 %s12, 1
        // Predicated region
        $region29: #{tpu_custom_call.1} parent=27 // pred_check
          %p144 = pneg %p45
        $region30: #{tpu_custom_call.1} parent=27 // pred_check_branch
          %146 = sbr.rel (%p144) target = $region32
        $region31: #{tpu_custom_call.1} parent=27 // pred_region
          %147 = dma.done [#allocation4], 16
        $region32: #{tpu_custom_call.1} parent=27 // pred_fallthru
          _
        %148 = sfence
        %p149 = pneg %p45
        %p150 = pneg %p42
        %p151 = scmp.lt.s32.totalorder %s21, 5
        %s152 = scalar_select %p151, %s21, 5
        %s153 = smul.addr %s152, 6
        %s154 = smul.addr %s153, 8
        %s155 = scalar_lea.vmem %s1, %s154
        %p156 = pneg %p71
        %p157 = pneg %p68
        %p158 = pneg %p99
        %p159 = pneg %p96
        %s160 = sand.u32 %s86, 1
        %s161 = scalar_lea.sflag [#allocation3], %s160
        %s162 = sand.u32 %s86, 1
        %s163 = smul.addr %s162, 24
        %s164 = scalar_lea.vmem [#allocation5], %s163
        %p165 = scmp.lt.s32.totalorder %s21, 5
        %s166 = scalar_select %p165, %s21, 5
        %s167 = smul.addr %s166, 6
        %s168 = smul.addr %s167, 8
        %s169 = scalar_lea.vmem %s1, %s168
        %s170 = sld [smem:[#allocation2]]
        %s171 = sld [smem:[#allocation2 + $0x1]]
        %s172 = sld [smem:[#allocation2 + $0x2]]
        %s173 = sld [smem:[#allocation2 + $0x3]]
        %s174 = sld [smem:[#allocation2 + $0x4]]
        %s175 = sld [smem:[#allocation2 + $0x5]]
        %s176 = sld [smem:[#allocation2 + $0x6]]
        %s177 = sld [smem:[#allocation2 + $0x7]]
        %s178 = sld [smem:[#allocation2 + $0x8]]
        %s179 = sld [smem:[#allocation2 + $0x9]]
        %s180 = sld [smem:[#allocation2 + $0xa]]
        %s181 = sld [smem:[#allocation2 + $0xb]]
        %s182 = sld [smem:[#allocation2 + $0xc]]
        %s183 = sld [smem:[#allocation2 + $0xd]]
        %s184 = sld [smem:[#allocation2 + $0xe]]
        %s185 = sld [smem:[#allocation2 + $0xf]]
        %s186 = sld [smem:[#allocation2 + $0x10]]
        %s187 = sld [smem:[#allocation2 + $0x11]]
        %s188 = sld [smem:[#allocation2 + $0x12]]
        %s189 = sld [smem:[#allocation2 + $0x13]]
        %s190 = sld [smem:[#allocation2 + $0x14]]
        %s191 = sld [smem:[#allocation2 + $0x15]]
        %s192 = sld [smem:[#allocation2 + $0x16]]
        %s193 = sld [smem:[#allocation2 + $0x17]]
        %s194 = sld [smem:[#allocation2 + $0x18]]
        %s195 = sld [smem:[#allocation2 + $0x19]]
        %s196 = sld [smem:[#allocation2 + $0x1a]]
        %v197 = vld [vmem:[%s169] sm:$0xff]
        %v198 = vld [vmem:[%s169 + $0x8] sm:$0xff]
        %v199 = vld [vmem:[%s169 + $0x10] sm:$0xff]
        %v200 = vstv %s170
        %v201 = vmul.f32 %v197, %v200
        %v202 = vmul.f32 %v198, %v200
        %v203 = vmul.f32 %v199, %v200
        %v204 = vstv %s171
        %v205 = vmul.f32 %v197, %v204
        %v206 = vmul.f32 %v198, %v204
        %v207 = vmul.f32 %v199, %v204
        %211 = vrot.lane.b32.xlu0 %v205, 127
        %v212 = vpop.permute.xlu0 %211
        %213 = vrot.lane.b32.xlu0 %v206, 127
        %v214 = vpop.permute.xlu0 %213
        %215 = vrot.lane.b32.xlu0 %v207, 127
        %v216 = vpop.permute.xlu0 %215
        %vm217 = vcmask 1039360
        %v218 = vsel %vm217, %v212, %v214
        %v219 = vsel %vm217, %v214, %v216
        %v223 = vadd.f32 %v201, %v218
        %v224 = vadd.f32 %v202, %v219
        %v225 = vadd.f32 %v203, %v216
        %v226 = vstv %s172
        %v227 = vmul.f32 %v197, %v226
        %v228 = vmul.f32 %v198, %v226
        %v229 = vmul.f32 %v199, %v226
        %233 = vrot.lane.b32.xlu0 %v227, 126
        %v234 = vpop.permute.xlu0 %233
        %235 = vrot.lane.b32.xlu0 %v228, 126
        %v236 = vpop.permute.xlu0 %235
        %237 = vrot.lane.b32.xlu0 %v229, 126
        %v238 = vpop.permute.xlu0 %237
        %vm239 = vcmask 1031168
        %v240 = vsel %vm239, %v234, %v236
        %v241 = vsel %vm239, %v236, %v238
        %v245 = vadd.f32 %v223, %v240
        %v246 = vadd.f32 %v224, %v241
        %v247 = vadd.f32 %v225, %v238
        %v248 = vstv %s173
        %v249 = vmul.f32 %v197, %v248
        %v250 = vmul.f32 %v198, %v248
        %v251 = vmul.f32 %v199, %v248
        %255 = vrot.lane.b32.xlu0 %v249, 110
        %v256 = vpop.permute.xlu0 %255
        %257 = vrot.lane.b32.xlu0 %v250, 110
        %v258 = vpop.permute.xlu0 %257
        %259 = vrot.lane.b32.xlu0 %v251, 110
        %v260 = vpop.permute.xlu0 %259
        %vm261 = vcmask 900096
        %v262 = vsel %vm261, %v256, %v258
        %v263 = vsel %vm261, %v258, %v260
        %v267 = vadd.f32 %v245, %v262
        %v268 = vadd.f32 %v246, %v263
        %v269 = vadd.f32 %v247, %v260
        %v270 = vstv %s174
        %v271 = vmul.f32 %v197, %v270
        %v272 = vmul.f32 %v198, %v270
        %v273 = vmul.f32 %v199, %v270
        %277 = vrot.lane.b32.xlu0 %v271, 109
        %v278 = vpop.permute.xlu0 %277
        %279 = vrot.lane.b32.xlu0 %v272, 109
        %v280 = vpop.permute.xlu0 %279
        %281 = vrot.lane.b32.xlu0 %v273, 109
        %v282 = vpop.permute.xlu0 %281
        %vm283 = vcmask 891904
        %v284 = vsel %vm283, %v278, %v280
        %v285 = vsel %vm283, %v280, %v282
        %v289 = vadd.f32 %v267, %v284
        %v290 = vadd.f32 %v268, %v285
        %v291 = vadd.f32 %v269, %v282
        %v292 = vstv %s175
        %v293 = vmul.f32 %v197, %v292
        %v294 = vmul.f32 %v198, %v292
        %v295 = vmul.f32 %v199, %v292
        %299 = vrot.lane.b32.xlu0 %v293, 108
        %v300 = vpop.permute.xlu0 %299
        %301 = vrot.lane.b32.xlu0 %v294, 108
        %v302 = vpop.permute.xlu0 %301
        %303 = vrot.lane.b32.xlu0 %v295, 108
        %v304 = vpop.permute.xlu0 %303
        %vm305 = vcmask 883712
        %v306 = vsel %vm305, %v300, %v302
        %v307 = vsel %vm305, %v302, %v304
        %v311 = vadd.f32 %v289, %v306
        %v312 = vadd.f32 %v290, %v307
        %v313 = vadd.f32 %v291, %v304
        %v314 = vstv %s176
        %v315 = vmul.f32 %v197, %v314
        %v316 = vmul.f32 %v198, %v314
        %v317 = vmul.f32 %v199, %v314
        %321 = vrot.lane.b32.xlu0 %v315, 92
        %v322 = vpop.permute.xlu0 %321
        %323 = vrot.lane.b32.xlu0 %v316, 92
        %v324 = vpop.permute.xlu0 %323
        %325 = vrot.lane.b32.xlu0 %v317, 92
        %v326 = vpop.permute.xlu0 %325
        %vm327 = vcmask 752640
        %v328 = vsel %vm327, %v322, %v324
        %v329 = vsel %vm327, %v324, %v326
        %v333 = vadd.f32 %v311, %v328
        %v334 = vadd.f32 %v312, %v329
        %v335 = vadd.f32 %v313, %v326
        %v336 = vstv %s177
        %v337 = vmul.f32 %v197, %v336
        %v338 = vmul.f32 %v198, %v336
        %v339 = vmul.f32 %v199, %v336
        %343 = vrot.lane.b32.xlu0 %v337, 91
        %v344 = vpop.permute.xlu0 %343
        %345 = vrot.lane.b32.xlu0 %v338, 91
        %v346 = vpop.permute.xlu0 %345
        %347 = vrot.lane.b32.xlu0 %v339, 91
        %v348 = vpop.permute.xlu0 %347
        %vm349 = vcmask 744448
        %v350 = vsel %vm349, %v344, %v346
        %v351 = vsel %vm349, %v346, %v348
        %v355 = vadd.f32 %v333, %v350
        %v356 = vadd.f32 %v334, %v351
        %v357 = vadd.f32 %v335, %v348
        %v358 = vstv %s178
        %v359 = vmul.f32 %v197, %v358
        %v360 = vmul.f32 %v198, %v358
        %v361 = vmul.f32 %v199, %v358
        %365 = vrot.lane.b32.xlu0 %v359, 90
        %v366 = vpop.permute.xlu0 %365
        %367 = vrot.lane.b32.xlu0 %v360, 90
        %v368 = vpop.permute.xlu0 %367
        %369 = vrot.lane.b32.xlu0 %v361, 90
        %v370 = vpop.permute.xlu0 %369
        %vm371 = vcmask 736256
        %v372 = vsel %vm371, %v366, %v368
        %v373 = vsel %vm371, %v368, %v370
        %v377 = vadd.f32 %v355, %v372
        %v378 = vadd.f32 %v356, %v373
        %v379 = vadd.f32 %v357, %v370
        %v380 = vld [vmem:[%s169] sm:$0xfe]
        %v381 = vld [vmem:[%s169 + $0x8] sm:$0xfe]
        %v382 = vld [vmem:[%s169 + $0x10] sm:$0xfe]
        %v383 = vld [vmem:[%s169 + $0x18] sm:$0x1]
        %v384 = vld [vmem:[%s169 + $0x20] sm:$0x1]
        %v385 = vld [vmem:[%s169 + $0x28] sm:$0x1]
        %v386 = vstv %s179
        %v387 = vmul.f32 %v380, %v386
        %v388 = vmul.f32 %v381, %v386
        %v389 = vmul.f32 %v382, %v386
        %v390 = vmul.f32 %v383, %v386
        %v391 = vmul.f32 %v384, %v386
        %v392 = vmul.f32 %v385, %v386
        %vm399 = vcmask 1046528
        %v400 = vrot.slane %v387, 1
        %v401 = vrot.slane %v390, 1
        %v402 = vsel %vm399, %v400, %v401
        %v403 = vrot.slane %v388, 1
        %v404 = vrot.slane %v391, 1
        %v405 = vsel %vm399, %v403, %v404
        %v406 = vrot.slane %v389, 1
        %v407 = vrot.slane %v392, 1
        %v408 = vsel %vm399, %v406, %v407
        %v412 = vadd.f32 %v377, %v402
        %v413 = vadd.f32 %v378, %v405
        %v414 = vadd.f32 %v379, %v408
        %v415 = vstv %s180
        %v416 = vmul.f32 %v380, %v415
        %v417 = vmul.f32 %v381, %v415
        %v418 = vmul.f32 %v382, %v415
        %v419 = vmul.f32 %v383, %v415
        %v420 = vmul.f32 %v384, %v415
        %v421 = vmul.f32 %v385, %v415
        %v428 = vrot.slane %v416, 1
        %v429 = vrot.slane %v419, 1
        %v430 = vsel %vm399, %v428, %v429
        %v431 = vrot.slane %v417, 1
        %v432 = vrot.slane %v420, 1
        %v433 = vsel %vm399, %v431, %v432
        %v434 = vrot.slane %v418, 1
        %v435 = vrot.slane %v421, 1
        %v436 = vsel %vm399, %v434, %v435
        %437 = vrot.lane.b32.xlu0 %v430, 127
        %v438 = vpop.permute.xlu0 %437
        %439 = vrot.lane.b32.xlu0 %v433, 127
        %v440 = vpop.permute.xlu0 %439
        %441 = vrot.lane.b32.xlu0 %v436, 127
        %v442 = vpop.permute.xlu0 %441
        %v443 = vsel %vm217, %v438, %v440
        %v444 = vsel %vm217, %v440, %v442
        %v448 = vadd.f32 %v412, %v443
        %v449 = vadd.f32 %v413, %v444
        %v450 = vadd.f32 %v414, %v442
        %v451 = vstv %s181
        %v452 = vmul.f32 %v380, %v451
        %v453 = vmul.f32 %v381, %v451
        %v454 = vmul.f32 %v382, %v451
        %v455 = vmul.f32 %v383, %v451
        %v456 = vmul.f32 %v384, %v451
        %v457 = vmul.f32 %v385, %v451
        %v464 = vrot.slane %v452, 1
        %v465 = vrot.slane %v455, 1
        %v466 = vsel %vm399, %v464, %v465
        %v467 = vrot.slane %v453, 1
        %v468 = vrot.slane %v456, 1
        %v469 = vsel %vm399, %v467, %v468
        %v470 = vrot.slane %v454, 1
        %v471 = vrot.slane %v457, 1
        %v472 = vsel %vm399, %v470, %v471
        %473 = vrot.lane.b32.xlu0 %v466, 126
        %v474 = vpop.permute.xlu0 %473
        %475 = vrot.lane.b32.xlu0 %v469, 126
        %v476 = vpop.permute.xlu0 %475
        %477 = vrot.lane.b32.xlu0 %v472, 126
        %v478 = vpop.permute.xlu0 %477
        %v479 = vsel %vm239, %v474, %v476
        %v480 = vsel %vm239, %v476, %v478
        %v484 = vadd.f32 %v448, %v479
        %v485 = vadd.f32 %v449, %v480
        %v486 = vadd.f32 %v450, %v478
        %v487 = vstv %s182
        %v488 = vmul.f32 %v380, %v487
        %v489 = vmul.f32 %v381, %v487
        %v490 = vmul.f32 %v382, %v487
        %v491 = vmul.f32 %v383, %v487
        %v492 = vmul.f32 %v384, %v487
        %v493 = vmul.f32 %v385, %v487
        %v500 = vrot.slane %v488, 1
        %v501 = vrot.slane %v491, 1
        %v502 = vsel %vm399, %v500, %v501
        %v503 = vrot.slane %v489, 1
        %v504 = vrot.slane %v492, 1
        %v505 = vsel %vm399, %v503, %v504
        %v506 = vrot.slane %v490, 1
        %v507 = vrot.slane %v493, 1
        %v508 = vsel %vm399, %v506, %v507
        %509 = vrot.lane.b32.xlu0 %v502, 110
        %v510 = vpop.permute.xlu0 %509
        %511 = vrot.lane.b32.xlu0 %v505, 110
        %v512 = vpop.permute.xlu0 %511
        %513 = vrot.lane.b32.xlu0 %v508, 110
        %v514 = vpop.permute.xlu0 %513
        %v515 = vsel %vm261, %v510, %v512
        %v516 = vsel %vm261, %v512, %v514
        %v520 = vadd.f32 %v484, %v515
        %v521 = vadd.f32 %v485, %v516
        %v522 = vadd.f32 %v486, %v514
        %v523 = vstv %s183
        %v524 = vmul.f32 %v380, %v523
        %v525 = vmul.f32 %v381, %v523
        %v526 = vmul.f32 %v382, %v523
        %v527 = vmul.f32 %v383, %v523
        %v528 = vmul.f32 %v384, %v523
        %v529 = vmul.f32 %v385, %v523
        %v536 = vrot.slane %v524, 1
        %v537 = vrot.slane %v527, 1
        %v538 = vsel %vm399, %v536, %v537
        %v539 = vrot.slane %v525, 1
        %v540 = vrot.slane %v528, 1
        %v541 = vsel %vm399, %v539, %v540
        %v542 = vrot.slane %v526, 1
        %v543 = vrot.slane %v529, 1
        %v544 = vsel %vm399, %v542, %v543
        %545 = vrot.lane.b32.xlu0 %v538, 109
        %v546 = vpop.permute.xlu0 %545
        %547 = vrot.lane.b32.xlu0 %v541, 109
        %v548 = vpop.permute.xlu0 %547
        %549 = vrot.lane.b32.xlu0 %v544, 109
        %v550 = vpop.permute.xlu0 %549
        %v551 = vsel %vm283, %v546, %v548
        %v552 = vsel %vm283, %v548, %v550
        %v556 = vadd.f32 %v520, %v551
        %v557 = vadd.f32 %v521, %v552
        %v558 = vadd.f32 %v522, %v550
        %v559 = vstv %s184
        %v560 = vmul.f32 %v380, %v559
        %v561 = vmul.f32 %v381, %v559
        %v562 = vmul.f32 %v382, %v559
        %v563 = vmul.f32 %v383, %v559
        %v564 = vmul.f32 %v384, %v559
        %v565 = vmul.f32 %v385, %v559
        %v572 = vrot.slane %v560, 1
        %v573 = vrot.slane %v563, 1
        %v574 = vsel %vm399, %v572, %v573
        %v575 = vrot.slane %v561, 1
        %v576 = vrot.slane %v564, 1
        %v577 = vsel %vm399, %v575, %v576
        %v578 = vrot.slane %v562, 1
        %v579 = vrot.slane %v565, 1
        %v580 = vsel %vm399, %v578, %v579
        %581 = vrot.lane.b32.xlu0 %v574, 108
        %v582 = vpop.permute.xlu0 %581
        %583 = vrot.lane.b32.xlu0 %v577, 108
        %v584 = vpop.permute.xlu0 %583
        %585 = vrot.lane.b32.xlu0 %v580, 108
        %v586 = vpop.permute.xlu0 %585
        %v587 = vsel %vm305, %v582, %v584
        %v588 = vsel %vm305, %v584, %v586
        %v592 = vadd.f32 %v556, %v587
        %v593 = vadd.f32 %v557, %v588
        %v594 = vadd.f32 %v558, %v586
        %v595 = vstv %s185
        %v596 = vmul.f32 %v380, %v595
        %v597 = vmul.f32 %v381, %v595
        %v598 = vmul.f32 %v382, %v595
        %v599 = vmul.f32 %v383, %v595
        %v600 = vmul.f32 %v384, %v595
        %v601 = vmul.f32 %v385, %v595
        %v608 = vrot.slane %v596, 1
        %v609 = vrot.slane %v599, 1
        %v610 = vsel %vm399, %v608, %v609
        %v611 = vrot.slane %v597, 1
        %v612 = vrot.slane %v600, 1
        %v613 = vsel %vm399, %v611, %v612
        %v614 = vrot.slane %v598, 1
        %v615 = vrot.slane %v601, 1
        %v616 = vsel %vm399, %v614, %v615
        %617 = vrot.lane.b32.xlu0 %v610, 92
        %v618 = vpop.permute.xlu0 %617
        %619 = vrot.lane.b32.xlu0 %v613, 92
        %v620 = vpop.permute.xlu0 %619
        %621 = vrot.lane.b32.xlu0 %v616, 92
        %v622 = vpop.permute.xlu0 %621
        %v623 = vsel %vm327, %v618, %v620
        %v624 = vsel %vm327, %v620, %v622
        %v628 = vadd.f32 %v592, %v623
        %v629 = vadd.f32 %v593, %v624
        %v630 = vadd.f32 %v594, %v622
        %v631 = vstv %s186
        %v632 = vmul.f32 %v380, %v631
        %v633 = vmul.f32 %v381, %v631
        %v634 = vmul.f32 %v382, %v631
        %v635 = vmul.f32 %v383, %v631
        %v636 = vmul.f32 %v384, %v631
        %v637 = vmul.f32 %v385, %v631
        %v644 = vrot.slane %v632, 1
        %v645 = vrot.slane %v635, 1
        %v646 = vsel %vm399, %v644, %v645
        %v647 = vrot.slane %v633, 1
        %v648 = vrot.slane %v636, 1
        %v649 = vsel %vm399, %v647, %v648
        %v650 = vrot.slane %v634, 1
        %v651 = vrot.slane %v637, 1
        %v652 = vsel %vm399, %v650, %v651
        %653 = vrot.lane.b32.xlu0 %v646, 91
        %v654 = vpop.permute.xlu0 %653
        %655 = vrot.lane.b32.xlu0 %v649, 91
        %v656 = vpop.permute.xlu0 %655
        %657 = vrot.lane.b32.xlu0 %v652, 91
        %v658 = vpop.permute.xlu0 %657
        %v659 = vsel %vm349, %v654, %v656
        %v660 = vsel %vm349, %v656, %v658
        %v664 = vadd.f32 %v628, %v659
        %v665 = vadd.f32 %v629, %v660
        %v666 = vadd.f32 %v630, %v658
        %v667 = vstv %s187
        %v668 = vmul.f32 %v380, %v667
        %v669 = vmul.f32 %v381, %v667
        %v670 = vmul.f32 %v382, %v667
        %v671 = vmul.f32 %v383, %v667
        %v672 = vmul.f32 %v384, %v667
        %v673 = vmul.f32 %v385, %v667
        %v680 = vrot.slane %v668, 1
        %v681 = vrot.slane %v671, 1
        %v682 = vsel %vm399, %v680, %v681
        %v683 = vrot.slane %v669, 1
        %v684 = vrot.slane %v672, 1
        %v685 = vsel %vm399, %v683, %v684
        %v686 = vrot.slane %v670, 1
        %v687 = vrot.slane %v673, 1
        %v688 = vsel %vm399, %v686, %v687
        %689 = vrot.lane.b32.xlu0 %v682, 90
        %v690 = vpop.permute.xlu0 %689
        %691 = vrot.lane.b32.xlu0 %v685, 90
        %v692 = vpop.permute.xlu0 %691
        %693 = vrot.lane.b32.xlu0 %v688, 90
        %v694 = vpop.permute.xlu0 %693
        %v695 = vsel %vm371, %v690, %v692
        %v696 = vsel %vm371, %v692, %v694
        %v700 = vadd.f32 %v664, %v695
        %v701 = vadd.f32 %v665, %v696
        %v702 = vadd.f32 %v666, %v694
        %v703 = vld [vmem:[%s169] sm:$0xfc]
        %v704 = vld [vmem:[%s169 + $0x8] sm:$0xfc]
        %v705 = vld [vmem:[%s169 + $0x10] sm:$0xfc]
        %v706 = vld [vmem:[%s169 + $0x18] sm:$0x3]
        %v707 = vld [vmem:[%s169 + $0x20] sm:$0x3]
        %v708 = vld [vmem:[%s169 + $0x28] sm:$0x3]
        %v709 = vstv %s188
        %v710 = vmul.f32 %v703, %v709
        %v711 = vmul.f32 %v704, %v709
        %v712 = vmul.f32 %v705, %v709
        %v713 = vmul.f32 %v706, %v709
        %v714 = vmul.f32 %v707, %v709
        %v715 = vmul.f32 %v708, %v709
        %vm722 = vcmask 1045504
        %v723 = vrot.slane %v710, 2
        %v724 = vrot.slane %v713, 2
        %v725 = vsel %vm722, %v723, %v724
        %v726 = vrot.slane %v711, 2
        %v727 = vrot.slane %v714, 2
        %v728 = vsel %vm722, %v726, %v727
        %v729 = vrot.slane %v712, 2
        %v730 = vrot.slane %v715, 2
        %v731 = vsel %vm722, %v729, %v730
        %v735 = vadd.f32 %v700, %v725
        %v736 = vadd.f32 %v701, %v728
        %v737 = vadd.f32 %v702, %v731
        %v738 = vstv %s189
        %v739 = vmul.f32 %v703, %v738
        %v740 = vmul.f32 %v704, %v738
        %v741 = vmul.f32 %v705, %v738
        %v742 = vmul.f32 %v706, %v738
        %v743 = vmul.f32 %v707, %v738
        %v744 = vmul.f32 %v708, %v738
        %v751 = vrot.slane %v739, 2
        %v752 = vrot.slane %v742, 2
        %v753 = vsel %vm722, %v751, %v752
        %v754 = vrot.slane %v740, 2
        %v755 = vrot.slane %v743, 2
        %v756 = vsel %vm722, %v754, %v755
        %v757 = vrot.slane %v741, 2
        %v758 = vrot.slane %v744, 2
        %v759 = vsel %vm722, %v757, %v758
        %760 = vrot.lane.b32.xlu0 %v753, 127
        %v761 = vpop.permute.xlu0 %760
        %762 = vrot.lane.b32.xlu0 %v756, 127
        %v763 = vpop.permute.xlu0 %762
        %764 = vrot.lane.b32.xlu0 %v759, 127
        %v765 = vpop.permute.xlu0 %764
        %v766 = vsel %vm217, %v761, %v763
        %v767 = vsel %vm217, %v763, %v765
        %v771 = vadd.f32 %v735, %v766
        %v772 = vadd.f32 %v736, %v767
        %v773 = vadd.f32 %v737, %v765
        %v774 = vstv %s190
        %v775 = vmul.f32 %v703, %v774
        %v776 = vmul.f32 %v704, %v774
        %v777 = vmul.f32 %v705, %v774
        %v778 = vmul.f32 %v706, %v774
        %v779 = vmul.f32 %v707, %v774
        %v780 = vmul.f32 %v708, %v774
        %v787 = vrot.slane %v775, 2
        %v788 = vrot.slane %v778, 2
        %v789 = vsel %vm722, %v787, %v788
        %v790 = vrot.slane %v776, 2
        %v791 = vrot.slane %v779, 2
        %v792 = vsel %vm722, %v790, %v791
        %v793 = vrot.slane %v777, 2
        %v794 = vrot.slane %v780, 2
        %v795 = vsel %vm722, %v793, %v794
        %796 = vrot.lane.b32.xlu0 %v789, 126
        %v797 = vpop.permute.xlu0 %796
        %798 = vrot.lane.b32.xlu0 %v792, 126
        %v799 = vpop.permute.xlu0 %798
        %800 = vrot.lane.b32.xlu0 %v795, 126
        %v801 = vpop.permute.xlu0 %800
        %v802 = vsel %vm239, %v797, %v799
        %v803 = vsel %vm239, %v799, %v801
        %v807 = vadd.f32 %v771, %v802
        %v808 = vadd.f32 %v772, %v803
        %v809 = vadd.f32 %v773, %v801
        %v810 = vstv %s191
        %v811 = vmul.f32 %v703, %v810
        %v812 = vmul.f32 %v704, %v810
        %v813 = vmul.f32 %v705, %v810
        %v814 = vmul.f32 %v706, %v810
        %v815 = vmul.f32 %v707, %v810
        %v816 = vmul.f32 %v708, %v810
        %v823 = vrot.slane %v811, 2
        %v824 = vrot.slane %v814, 2
        %v825 = vsel %vm722, %v823, %v824
        %v826 = vrot.slane %v812, 2
        %v827 = vrot.slane %v815, 2
        %v828 = vsel %vm722, %v826, %v827
        %v829 = vrot.slane %v813, 2
        %v830 = vrot.slane %v816, 2
        %v831 = vsel %vm722, %v829, %v830
        %832 = vrot.lane.b32.xlu0 %v825, 110
        %v833 = vpop.permute.xlu0 %832
        %834 = vrot.lane.b32.xlu0 %v828, 110
        %v835 = vpop.permute.xlu0 %834
        %836 = vrot.lane.b32.xlu0 %v831, 110
        %v837 = vpop.permute.xlu0 %836
        %v838 = vsel %vm261, %v833, %v835
        %v839 = vsel %vm261, %v835, %v837
        %v843 = vadd.f32 %v807, %v838
        %v844 = vadd.f32 %v808, %v839
        %v845 = vadd.f32 %v809, %v837
        %v846 = vstv %s192
        %v847 = vmul.f32 %v703, %v846
        %v848 = vmul.f32 %v704, %v846
        %v849 = vmul.f32 %v705, %v846
        %v850 = vmul.f32 %v706, %v846
        %v851 = vmul.f32 %v707, %v846
        %v852 = vmul.f32 %v708, %v846
        %v859 = vrot.slane %v847, 2
        %v860 = vrot.slane %v850, 2
        %v861 = vsel %vm722, %v859, %v860
        %v862 = vrot.slane %v848, 2
        %v863 = vrot.slane %v851, 2
        %v864 = vsel %vm722, %v862, %v863
        %v865 = vrot.slane %v849, 2
        %v866 = vrot.slane %v852, 2
        %v867 = vsel %vm722, %v865, %v866
        %868 = vrot.lane.b32.xlu0 %v861, 109
        %v869 = vpop.permute.xlu0 %868
        %870 = vrot.lane.b32.xlu0 %v864, 109
        %v871 = vpop.permute.xlu0 %870
        %872 = vrot.lane.b32.xlu0 %v867, 109
        %v873 = vpop.permute.xlu0 %872
        %v874 = vsel %vm283, %v869, %v871
        %v875 = vsel %vm283, %v871, %v873
        %v879 = vadd.f32 %v843, %v874
        %v880 = vadd.f32 %v844, %v875
        %v881 = vadd.f32 %v845, %v873
        %v882 = vstv %s193
        %v883 = vmul.f32 %v703, %v882
        %v884 = vmul.f32 %v704, %v882
        %v885 = vmul.f32 %v705, %v882
        %v886 = vmul.f32 %v706, %v882
        %v887 = vmul.f32 %v707, %v882
        %v888 = vmul.f32 %v708, %v882
        %v895 = vrot.slane %v883, 2
        %v896 = vrot.slane %v886, 2
        %v897 = vsel %vm722, %v895, %v896
        %v898 = vrot.slane %v884, 2
        %v899 = vrot.slane %v887, 2
        %v900 = vsel %vm722, %v898, %v899
        %v901 = vrot.slane %v885, 2
        %v902 = vrot.slane %v888, 2
        %v903 = vsel %vm722, %v901, %v902
        %904 = vrot.lane.b32.xlu0 %v897, 108
        %v905 = vpop.permute.xlu0 %904
        %906 = vrot.lane.b32.xlu0 %v900, 108
        %v907 = vpop.permute.xlu0 %906
        %908 = vrot.lane.b32.xlu0 %v903, 108
        %v909 = vpop.permute.xlu0 %908
        %v910 = vsel %vm305, %v905, %v907
        %v911 = vsel %vm305, %v907, %v909
        %v915 = vadd.f32 %v879, %v910
        %v916 = vadd.f32 %v880, %v911
        %v917 = vadd.f32 %v881, %v909
        %v918 = vstv %s194
        %v919 = vmul.f32 %v703, %v918
        %v920 = vmul.f32 %v704, %v918
        %v921 = vmul.f32 %v705, %v918
        %v922 = vmul.f32 %v706, %v918
        %v923 = vmul.f32 %v707, %v918
        %v924 = vmul.f32 %v708, %v918
        %v931 = vrot.slane %v919, 2
        %v932 = vrot.slane %v922, 2
        %v933 = vsel %vm722, %v931, %v932
        %v934 = vrot.slane %v920, 2
        %v935 = vrot.slane %v923, 2
        %v936 = vsel %vm722, %v934, %v935
        %v937 = vrot.slane %v921, 2
        %v938 = vrot.slane %v924, 2
        %v939 = vsel %vm722, %v937, %v938
        %940 = vrot.lane.b32.xlu0 %v933, 92
        %v941 = vpop.permute.xlu0 %940
        %942 = vrot.lane.b32.xlu0 %v936, 92
        %v943 = vpop.permute.xlu0 %942
        %944 = vrot.lane.b32.xlu0 %v939, 92
        %v945 = vpop.permute.xlu0 %944
        %v946 = vsel %vm327, %v941, %v943
        %v947 = vsel %vm327, %v943, %v945
        %v951 = vadd.f32 %v915, %v946
        %v952 = vadd.f32 %v916, %v947
        %v953 = vadd.f32 %v917, %v945
        %v954 = vstv %s195
        %v955 = vmul.f32 %v703, %v954
        %v956 = vmul.f32 %v704, %v954
        %v957 = vmul.f32 %v705, %v954
        %v958 = vmul.f32 %v706, %v954
        %v959 = vmul.f32 %v707, %v954
        %v960 = vmul.f32 %v708, %v954
        %v967 = vrot.slane %v955, 2
        %v968 = vrot.slane %v958, 2
        %v969 = vsel %vm722, %v967, %v968
        %v970 = vrot.slane %v956, 2
        %v971 = vrot.slane %v959, 2
        %v972 = vsel %vm722, %v970, %v971
        %v973 = vrot.slane %v957, 2
        %v974 = vrot.slane %v960, 2
        %v975 = vsel %vm722, %v973, %v974
        %976 = vrot.lane.b32.xlu0 %v969, 91
        %v977 = vpop.permute.xlu0 %976
        %978 = vrot.lane.b32.xlu0 %v972, 91
        %v979 = vpop.permute.xlu0 %978
        %980 = vrot.lane.b32.xlu0 %v975, 91
        %v981 = vpop.permute.xlu0 %980
        %v982 = vsel %vm349, %v977, %v979
        %v983 = vsel %vm349, %v979, %v981
        %v987 = vadd.f32 %v951, %v982
        %v988 = vadd.f32 %v952, %v983
        %v989 = vadd.f32 %v953, %v981
        %v990 = vstv %s196
        %v991 = vmul.f32 %v703, %v990
        %v992 = vmul.f32 %v704, %v990
        %v993 = vmul.f32 %v705, %v990
        %v994 = vmul.f32 %v706, %v990
        %v995 = vmul.f32 %v707, %v990
        %v996 = vmul.f32 %v708, %v990
        %v1003 = vrot.slane %v991, 2
        %v1004 = vrot.slane %v994, 2
        %v1005 = vsel %vm722, %v1003, %v1004
        %v1006 = vrot.slane %v992, 2
        %v1007 = vrot.slane %v995, 2
        %v1008 = vsel %vm722, %v1006, %v1007
        %v1009 = vrot.slane %v993, 2
        %v1010 = vrot.slane %v996, 2
        %v1011 = vsel %vm722, %v1009, %v1010
        %1012 = vrot.lane.b32.xlu0 %v1005, 90
        %v1013 = vpop.permute.xlu0 %1012
        %1014 = vrot.lane.b32.xlu0 %v1008, 90
        %v1015 = vpop.permute.xlu0 %1014
        %1016 = vrot.lane.b32.xlu0 %v1011, 90
        %v1017 = vpop.permute.xlu0 %1016
        %v1018 = vsel %vm371, %v1013, %v1015
        %v1019 = vsel %vm371, %v1015, %v1017
        %v1023 = vadd.f32 %v987, %v1018
        %v1024 = vadd.f32 %v988, %v1019
        %v1025 = vadd.f32 %v989, %v1017
        %1026 = vst [vmem:[%s164] sm:$0xff] %v1023
        %1027 = vst [vmem:[%s164 + $0x8] sm:$0xff] %v1024
        %vm1028 = vcmask 261120
        %1029 = vst.msk [vmem:[%s164 + $0x10] sm:$0xff] %vm1028, %v1025
        %s1030 = sand.u32 %s86, 1
        %s1031 = scalar_lea.sflag [#allocation3], %s1030
        %s1032 = sand.u32 %s86, 1
        %s1033 = smul.addr %s1032, 24
        %s1034 = scalar_lea.vmem [#allocation5], %s1033
        // Predicated region
        $region33: #{tpu_custom_call.1} parent=27 // pred_check
          %p1035 = pneg %p96
        $region34: #{tpu_custom_call.1} parent=27 // pred_check_branch
          %1037 = sbr.rel (%p1035) target = $region36
        $region35: #{tpu_custom_call.1} parent=27 // pred_region
          %s1039 = ssub.s32 384, 384
          %1040 = vsyncadd %s1031, %s1039
          %s1041 = smul.addr %s22, 3
          %s1042 = smul.addr %s21, 3
          %s1043 = sadd.s32 %s1041, %s1042
          %s1044 = smul.addr %s1043, 128
          %s1045 = scalar_lea.hbm %s2, %s1044
          %s1047 = sshll.u32 %s1034, 4
          %s1048 = int_to_ptr.vmem [resolvable:$true] %s1047
          %1050 = dma.vmem_to_hbm [thread:$0]  %s1048, 384, %s1045, %s1031
        $region36: #{tpu_custom_call.1} parent=27 // pred_fallthru
          _
      $region28: #{tpu_custom_call.1} parent=5 // pred_fallthru
        _
      %p1051 = scmp.le.s32.totalorder 2, %s12
      // Predicated region
      $region37: #{tpu_custom_call.1} parent=5 // pred_check
        %p1052 = pneg %p1051
      $region38: #{tpu_custom_call.1} parent=5 // pred_check_branch
        %1054 = sbr.rel (%p1052) target = $region40
      $region39: #{tpu_custom_call.1} parent=5 // pred_region
        %s1055 = ssub.s32 %s12, 2
        // Predicated region
        $region41: #{tpu_custom_call.1} parent=39 // pred_check
          %p1056 = pneg %p102
        $region42: #{tpu_custom_call.1} parent=39 // pred_check_branch
          %1058 = sbr.rel (%p1056) target = $region44
        $region43: #{tpu_custom_call.1} parent=39 // pred_region
          %s1059 = sand.u32 %s87, 1
          %s1060 = scalar_lea.sflag [#allocation3], %s1059
          %s1061 = sand.u32 %s87, 1
          %s1062 = smul.addr %s1061, 24
          %s1063 = scalar_lea.vmem [#allocation5], %s1062
          %1064 = dma.done %s1060, 384
        $region44: #{tpu_custom_call.1} parent=39 // pred_fallthru
          _
      $region40: #{tpu_custom_call.1} parent=5 // pred_fallthru
        _
    $region6: #{tpu_custom_call.1} parent=1 // loop_footer
      %s16 = sadd.s32 1, %s12
    $region7: #{tpu_custom_call.1} parent=1 // loop_footer_branch
      %11 = sbr.rel target = $region3
    $region8: #{tpu_custom_call.1} parent=1 // loop_exit
      _
    %1065 = vsyncpa [#allocation3], 1
    %s1066 = scalar_lea.sflag [#allocation3], 1
    %1067 = vsyncpa %s1066, 1
    %1068 = vsyncpa [#allocation4], 1
    %s1069 = scalar_lea.sflag [#allocation4], 1
    %1070 = vsyncpa %s1069, 1

</llo_original>
